<compile_context>
chip_gen: v6e
topology: v6e:2x2x1
jax: 0.10.0
libtpu: 0.0.40
codegen_flags: <defaults>
</compile_context>

<pallas_src>
import functools

import jax
import jax.numpy as jnp
import numpy as np
from jax.experimental import pallas as pl
from jax.experimental.pallas import tpu as pltpu

TEMPERATURE = 0.07
_GRANULE = 16          # bf16 sublane packing granule
_NEG_INF = -1e30       # f32-safe mask value (sim stays f32)


def _round_up(x, m):
    return -(-x // m) * m


def _vcl_kernel(q_ref, k_ref, lab_ref, out_ref, m_sc, l_sc, p_sc,
                *, batch, tk, k_resident, has_pad):
    """One (query-tile, key-tile) step of a flash-style contrastive CE loss.

    q_ref   [tq, D]     pre-normalized query rows, already scaled by sqrt(1/T)
    k_ref   [tk, D]     (streaming) or [b_pad, D] (K-resident) key rows
    lab_ref [tq, 1]     f32 labels in {0., 1.}
    out_ref [tq, 1]     per-row loss, written on the last key step
    m/l/p_sc [tq,1] f32 running max / running sum / target logit
    """
    ki = pl.program_id(1)

    @pl.when(ki == 0)
    def _init():
        m_sc[...] = jnp.full(m_sc.shape, -jnp.inf, jnp.float32)
        l_sc[...] = jnp.zeros(l_sc.shape, jnp.float32)

    q = q_ref[...]
    if k_resident:
        start = pl.multiple_of(ki * tk, tk)
        k = k_ref[pl.ds(start, tk), :]
    else:
        k = k_ref[...]

    # sim[i, j] = <q_i, k_j> / T   (sqrt(1/T) folded into both operands)
    sim = jax.lax.dot_general(q, k, (((1,), (1,)), ((), ())),
                              preferred_element_type=jnp.float32)   # [tq, tk] f32

    # Target logit: construct_visual_labels only emits labels in {0, 1}, so the
    # target column always lives in key block 0 (columns 0 / 1) -> one select,
    # no B^2 one-hot pass.  Columns 0/1 are always real rows (B >= 2 asserted).
    @pl.when(ki == 0)
    def _pick():
        lab = lab_ref[...]                                  # [tq, 1] in {0., 1.}
        s0 = sim[:, 0:1]
        s1 = sim[:, 1:2]
        p_sc[...] = s0 + lab * (s1 - s0)

    # Padded key columns exist only when has_pad (static); statically skipped
    # otherwise.  Compare a local column iota against a per-step scalar bound.
    if has_pad:
        col = jax.lax.broadcasted_iota(jnp.int32, sim.shape, 1)
        sim = jnp.where(col < batch - ki * tk, sim, _NEG_INF)

    # Online logsumexp over key blocks.
    m_prev = m_sc[...]
    m_new = jnp.maximum(m_prev, jnp.max(sim, axis=1, keepdims=True))
    l_sc[...] = (jnp.exp(m_prev - m_new) * l_sc[...]
                 + jnp.sum(jnp.exp(sim - m_new), axis=1, keepdims=True))
    m_sc[...] = m_new

    @pl.when(ki == pl.num_programs(1) - 1)
    def _finish():
        out_ref[...] = m_sc[...] + jnp.log(l_sc[...]) - p_sc[...]


def construct_visual_labels(visual_ids, anchor_idx, batch_size):
    """Exact host-side (numpy/python) replay of the PyTorch sequential pair loop.

    NOTE: the PyTorch docstring claims anchor_idx is [batch_size], but the code
    only works with a scalar index; we treat it as a scalar.
    """
    ids = [int(v) for v in np.asarray(visual_ids)]
    anchor_id = ids[int(anchor_idx)]
    labels = np.zeros((batch_size,), dtype=np.int32)
    for i in range(batch_size):
        for j in range(i + 1, batch_size):
            if ids[i] == ids[j]:
                if ids[i] == anchor_id:
                    labels[i] = 1
                    labels[j] = 1
            elif ids[i] == anchor_id or ids[j] == anchor_id:
                labels[i] = 0
                labels[j] = 0
    return labels


def _tile_sizes(B):
    if B > 256:
        return 256, 128                       # 256x128 f32 sim slab = 32 vregs
    if B > 2 * _GRANULE:
        t = min(128, _round_up(-(-B // 2), _GRANULE))   # two query tiles (megacore)
        return t, t
    t = _round_up(max(B, 1), _GRANULE)
    return t, t


def visual_contrastive_loss(visual_feat, visual_ids, anchor_idx,
                            temperature=TEMPERATURE, mxu_dtype=jnp.bfloat16):
    B, D = visual_feat.shape
    assert B >= 2, "contrastive loss needs at least 2 samples"

    labels = construct_visual_labels(visual_ids, anchor_idx, B)
    # The in-kernel target-logit pick hard-codes labels in {0, 1}; assert it.
    assert set(np.unique(labels).tolist()) <= {0, 1}

    tq, tk = _tile_sizes(B)
    b_pad = _round_up(B, tq)
    assert b_pad % tk == 0
    n_q, n_k = b_pad // tq, b_pad // tk
    has_pad = b_pad != B

    # One-pass normalization (F.normalize, eps=1e-12) with sqrt(1/T) folded in
    # so sim = <q', k'> already carries 1/temperature; bf16 operands halve the
    # key-stream HBM bytes and run the MXU at its bf16 rate (f32 accumulation).
    x = jnp.asarray(visual_feat, jnp.float32)
    inv_norm = jax.lax.rsqrt(
        jnp.maximum(jnp.sum(x * x, axis=1, keepdims=True), 1e-24))
    scale = inv_norm * np.float32(np.sqrt(1.0 / float(temperature)))
    feat_n = (x * scale).astype(mxu_dtype)
    if has_pad:
        feat_n = jnp.pad(feat_n, ((0, b_pad - B), (0, 0)))

    lab = np.zeros((b_pad, 1), np.float32)
    lab[:B, 0] = labels
    lab = jnp.asarray(lab)

    itemsize = jnp.dtype(mxu_dtype).itemsize
    # K-resident fast path: a constant key block index makes Pallas fetch the
    # whole normalized key matrix into VMEM once (no n_q-fold re-streaming);
    # budget assumes double-buffered allocations.
    k_resident = (n_q > 1 and n_k > 1 and
                  2 * (b_pad + tq) * D * itemsize <= 20 * 1024 * 1024)
    if k_resident:
        k_spec = pl.BlockSpec((b_pad, D), lambda qi, ki: (0, 0))
        k_rows = b_pad
    else:
        # TODO(synk): sweep pipeline_mode=pl.Buffered(3) on the key spec for very
        # large D if the per-step key DMA is still exposed behind the matmul.
        k_spec = pl.BlockSpec((tk, D), lambda qi, ki: (ki, 0))
        k_rows = tk

    est_vmem = 2 * (tq + k_rows) * D * itemsize
    vmem_limit = 48 * 1024 * 1024 if est_vmem > 12 * 1024 * 1024 else None

    kernel = functools.partial(_vcl_kernel, batch=B, tk=tk,
                               k_resident=k_resident, has_pad=has_pad)

    row_losses = pl.pallas_call(
        kernel,
        out_shape=jax.ShapeDtypeStruct((b_pad, 1), jnp.float32),
        grid_spec=pltpu.PrefetchScalarGridSpec(
            num_scalar_prefetch=0,
            grid=(n_q, n_k),
            in_specs=[
                pl.BlockSpec((tq, D), lambda qi, ki: (qi, 0)),   # query rows
                k_spec,                                          # key rows
                pl.BlockSpec((tq, 1), lambda qi, ki: (qi, 0)),   # labels
            ],
            out_specs=pl.BlockSpec((tq, 1), lambda qi, ki: (qi, 0)),
            scratch_shapes=[pltpu.VMEM((tq, 1), jnp.float32),    # running max
                            pltpu.VMEM((tq, 1), jnp.float32),    # running sum
                            pltpu.VMEM((tq, 1), jnp.float32)],   # target logit
        ),
        compiler_params=pltpu.CompilerParams(
            dimension_semantics=("parallel", "arbitrary"),
            vmem_limit_bytes=vmem_limit),
    )(feat_n, feat_n, lab)

    # Padded query rows hold garbage; drop them before the tiny O(B) reduction.
    return jnp.sum(row_losses[:B, 0]) / B


# ----------------------------- references ----------------------------------
def _reference_loss(visual_feat, labels, temperature=TEMPERATURE):
    """Pure-JAX f32 replay of the PyTorch forward (semantic check)."""
    x = jnp.asarray(visual_feat, jnp.float32)
    xn = x / jnp.maximum(jnp.linalg.norm(x, axis=1, keepdims=True), 1e-12)
    sim = jnp.dot(xn, xn.T, precision=jax.lax.Precision.HIGHEST) / temperature
    logp = jax.nn.log_softmax(sim, axis=1)
    b = x.shape[0]
    return -jnp.mean(logp[jnp.arange(b), jnp.asarray(labels)])


def _matched_reference(visual_feat, labels, temperature=TEMPERATURE,
                       mxu_dtype=jnp.bfloat16):
    """Reference using the same pre-normalized bf16 operands as the kernel."""
    x = jnp.asarray(visual_feat, jnp.float32)
    inv_norm = jax.lax.rsqrt(
        jnp.maximum(jnp.sum(x * x, axis=1, keepdims=True), 1e-24))
    f = (x * (inv_norm * np.float32(np.sqrt(1.0 / float(temperature))))
         ).astype(mxu_dtype).astype(jnp.float32)
    sim = jnp.dot(f, f.T, precision=jax.lax.Precision.HIGHEST)
    logp = jax.nn.log_softmax(sim, axis=1)
    b = x.shape[0]
    return -jnp.mean(logp[jnp.arange(b), jnp.asarray(labels)])


if __name__ == "__main__":
    key = jax.random.PRNGKey(0)
    k1, k2, k3 = jax.random.split(key, 3)

    # --- small shape: single padded tile, streaming key path, has_pad=True ---
    B, D = 8, 32
    visual_feat = jax.random.normal(k1, (B, D), dtype=jnp.float32)
    visual_ids = np.array([1, 2, 1, 3, 1, 2, 1, 3], dtype=np.int32)
    anchor_idx = 0   # scalar anchor (see construct_visual_labels note)

    loss = jax.block_until_ready(
        visual_contrastive_loss(visual_feat, visual_ids, anchor_idx))
    labels = construct_visual_labels(visual_ids, anchor_idx, B)
    ref_same_prec = jax.block_until_ready(_matched_reference(visual_feat, labels))
    ref_f32 = jax.block_until_ready(_reference_loss(visual_feat, labels))
    assert np.allclose(np.asarray(loss), np.asarray(ref_same_prec),
                       rtol=1e-4, atol=1e-4), (loss, ref_same_prec)
    assert np.allclose(np.asarray(loss), np.asarray(ref_f32),
                       rtol=5e-2, atol=5e-2), (loss, ref_f32)

    # --- larger shape: 256x128 tiles, K-resident VMEM path, no padding ---
    B2, D2 = 512, 128
    feat2 = jax.random.normal(k2, (B2, D2), dtype=jnp.float32)
    ids2 = np.asarray(jax.random.randint(k3, (B2,), 0, 16, dtype=jnp.int32))
    anchor2 = 5
    loss2 = jax.block_until_ready(
        visual_contrastive_loss(feat2, ids2, anchor2))
    labels2 = construct_visual_labels(ids2, anchor2, B2)
    ref2 = jax.block_until_ready(_matched_reference(feat2, labels2))
    assert np.allclose(np.asarray(loss2), np.asarray(ref2),
                       rtol=1e-4, atol=1e-4), (loss2, ref2)

    print("KERNEL_OK")
</pallas_src>

<mosaic_0001>
module attributes {stable_mosaic.version = 11 : i64} {
  func.func @_vcl_kernel(%arg0: i32, %arg1: i32, %arg2: memref<16x32xbf16, #tpu.memory_space<vmem>>, %arg3: memref<16x32xbf16, #tpu.memory_space<vmem>>, %arg4: memref<16x1xf32, #tpu.memory_space<vmem>>, %arg5: memref<16x1xf32, #tpu.memory_space<vmem>>, %arg6: memref<16x1xf32, #tpu.memory_space<vmem>>, %arg7: memref<16x1xf32, #tpu.memory_space<vmem>>, %arg8: memref<16x1xf32, #tpu.memory_space<vmem>>) attributes {dimension_semantics = [#tpu.dimension_semantics<parallel>, #tpu.dimension_semantics<arbitrary>], iteration_bounds = array<i64: 1, 1>, scalar_prefetch = 0 : i64, scratch_operands = 3 : i64, tpu.core_type = #tpu.core_type<tc>, window_params = [{transform_indices = @transform_0, window_bounds = array<i64: 16, 32>}, {transform_indices = @transform_1, window_bounds = array<i64: 16, 32>}, {transform_indices = @transform_2, window_bounds = array<i64: 16, 1>}, {transform_indices = @transform_3, window_bounds = array<i64: 16, 1>}]} {
    %c0_i32 = arith.constant 0 : i32
    %0 = arith.cmpi eq, %arg1, %c0_i32 : i32
    %1 = arith.extui %0 : i1 to i32
    %c0_i32_0 = arith.constant 0 : i32
    %2 = arith.cmpi ne, %1, %c0_i32_0 : i32
    scf.if %2 {
      %cst_19 = arith.constant 0xFF800000 : f32
      %35 = vector.broadcast %cst_19 : f32 to vector<16x1xf32>
      %c0_20 = arith.constant 0 : index
      %c0_21 = arith.constant 0 : index
      %36 = vector.load %arg6[%c0_20, %c0_21] : memref<16x1xf32, #tpu.memory_space<vmem>>, vector<16x1xf32>
      tpu.vector_store %arg6[%c0_20, %c0_21], %35 {strides = array<i32>} : memref<16x1xf32, #tpu.memory_space<vmem>>, vector<16x1xf32>,
      %cst_22 = arith.constant 0.000000e+00 : f32
      %37 = vector.broadcast %cst_22 : f32 to vector<16x1xf32>
      %c0_23 = arith.constant 0 : index
      %c0_24 = arith.constant 0 : index
      %38 = vector.load %arg7[%c0_23, %c0_24] : memref<16x1xf32, #tpu.memory_space<vmem>>, vector<16x1xf32>
      tpu.vector_store %arg7[%c0_23, %c0_24], %37 {strides = array<i32>} : memref<16x1xf32, #tpu.memory_space<vmem>>, vector<16x1xf32>,
    } else {
    }
    %c0 = arith.constant 0 : index
    %c0_1 = arith.constant 0 : index
    %3 = vector.load %arg2[%c0, %c0_1] : memref<16x32xbf16, #tpu.memory_space<vmem>>, vector<16x32xbf16>
    %c0_2 = arith.constant 0 : index
    %c0_3 = arith.constant 0 : index
    %4 = vector.load %arg3[%c0_2, %c0_3] : memref<16x32xbf16, #tpu.memory_space<vmem>>, vector<16x32xbf16>
    %cst = arith.constant dense<0.000000e+00> : vector<16x16xf32>
    %5 = tpu.matmul %3, %4, %cst {dimension_numbers = #tpu.dot_dimension_numbers<[1], [1], [0], [0], [0, 0, 1, 0], [], []>} : vector<16x32xbf16>, vector<16x32xbf16>, vector<16x16xf32> -> vector<16x16xf32>
    %c0_i32_4 = arith.constant 0 : i32
    %6 = arith.cmpi eq, %arg1, %c0_i32_4 : i32
    %7 = arith.extui %6 : i1 to i32
    %c0_i32_5 = arith.constant 0 : i32
    %8 = arith.cmpi ne, %7, %c0_i32_5 : i32
    scf.if %8 {
      %c0_19 = arith.constant 0 : index
      %c0_20 = arith.constant 0 : index
      %35 = vector.load %arg4[%c0_19, %c0_20] : memref<16x1xf32, #tpu.memory_space<vmem>>, vector<16x1xf32>
      %36 = vector.extract_strided_slice %5 {offsets = [0, 0], sizes = [16, 1], strides = [1, 1]} : vector<16x16xf32> to vector<16x1xf32>
      %37 = vector.extract_strided_slice %5 {offsets = [0, 1], sizes = [16, 1], strides = [1, 1]} : vector<16x16xf32> to vector<16x1xf32>
      %38 = arith.subf %37, %36 : vector<16x1xf32>
      %39 = arith.mulf %35, %38 : vector<16x1xf32>
      %40 = arith.addf %36, %39 : vector<16x1xf32>
      %c0_21 = arith.constant 0 : index
      %c0_22 = arith.constant 0 : index
      %41 = vector.load %arg8[%c0_21, %c0_22] : memref<16x1xf32, #tpu.memory_space<vmem>>, vector<16x1xf32>
      tpu.vector_store %arg8[%c0_21, %c0_22], %40 {strides = array<i32>} : memref<16x1xf32, #tpu.memory_space<vmem>>, vector<16x1xf32>,
    } else {
    }
    %9 = tpu.iota {dimensions = array<i32: 1>} : vector<16x16xi32>
    %c16_i32 = arith.constant 16 : i32
    %10 = arith.muli %arg1, %c16_i32 : i32
    %c8_i32 = arith.constant 8 : i32
    %11 = arith.subi %c8_i32, %10 : i32
    %12 = vector.broadcast %11 : i32 to vector<16x16xi32>
    %13 = arith.cmpi slt, %9, %12 : vector<16x16xi32>
    %cst_6 = arith.constant -1.000000e+30 : f32
    %14 = vector.broadcast %cst_6 : f32 to vector<16x16xf32>
    %15 = arith.select %13, %5, %14 : vector<16x16xi1>, vector<16x16xf32>
    %c0_7 = arith.constant 0 : index
    %c0_8 = arith.constant 0 : index
    %16 = vector.load %arg6[%c0_7, %c0_8] : memref<16x1xf32, #tpu.memory_space<vmem>>, vector<16x1xf32>
    %cst_9 = arith.constant dense<0xFF800000> : vector<16xf32>
    %17 = vector.multi_reduction <maximumf>, %15, %cst_9 [1] : vector<16x16xf32> to vector<16xf32>
    %18 = vector.shape_cast %17 : vector<16xf32> to vector<16x1xf32>
    %19 = arith.maximumf %16, %18 : vector<16x1xf32>
    %20 = arith.subf %16, %19 : vector<16x1xf32>
    %21 = math.exp %20 : vector<16x1xf32>
    %c0_10 = arith.constant 0 : index
    %c0_11 = arith.constant 0 : index
    %22 = vector.load %arg7[%c0_10, %c0_11] : memref<16x1xf32, #tpu.memory_space<vmem>>, vector<16x1xf32>
    %23 = arith.mulf %21, %22 : vector<16x1xf32>
    %24 = vector.broadcast %19 : vector<16x1xf32> to vector<16x16xf32>
    %25 = arith.subf %15, %24 : vector<16x16xf32>
    %26 = math.exp %25 : vector<16x16xf32>
    %cst_12 = arith.constant dense<0.000000e+00> : vector<16xf32>
    %27 = vector.multi_reduction <add>, %26, %cst_12 [1] : vector<16x16xf32> to vector<16xf32>
    %28 = vector.shape_cast %27 : vector<16xf32> to vector<16x1xf32>
    %29 = arith.addf %23, %28 : vector<16x1xf32>
    %c0_13 = arith.constant 0 : index
    %c0_14 = arith.constant 0 : index
    %30 = vector.load %arg7[%c0_13, %c0_14] : memref<16x1xf32, #tpu.memory_space<vmem>>, vector<16x1xf32>
    tpu.vector_store %arg7[%c0_13, %c0_14], %29 {strides = array<i32>} : memref<16x1xf32, #tpu.memory_space<vmem>>, vector<16x1xf32>,
    %c0_15 = arith.constant 0 : index
    %c0_16 = arith.constant 0 : index
    %31 = vector.load %arg6[%c0_15, %c0_16] : memref<16x1xf32, #tpu.memory_space<vmem>>, vector<16x1xf32>
    tpu.vector_store %arg6[%c0_15, %c0_16], %19 {strides = array<i32>} : memref<16x1xf32, #tpu.memory_space<vmem>>, vector<16x1xf32>,
    %c0_i32_17 = arith.constant 0 : i32
    %32 = arith.cmpi eq, %arg1, %c0_i32_17 : i32
    %33 = arith.extui %32 : i1 to i32
    %c0_i32_18 = arith.constant 0 : i32
    %34 = arith.cmpi ne, %33, %c0_i32_18 : i32
    scf.if %34 {
      %c0_19 = arith.constant 0 : index
      %c0_20 = arith.constant 0 : index
      %35 = vector.load %arg6[%c0_19, %c0_20] : memref<16x1xf32, #tpu.memory_space<vmem>>, vector<16x1xf32>
      %c0_21 = arith.constant 0 : index
      %c0_22 = arith.constant 0 : index
      %36 = vector.load %arg7[%c0_21, %c0_22] : memref<16x1xf32, #tpu.memory_space<vmem>>, vector<16x1xf32>
      %37 = math.log %36 : vector<16x1xf32>
      %38 = arith.addf %35, %37 : vector<16x1xf32>
      %c0_23 = arith.constant 0 : index
      %c0_24 = arith.constant 0 : index
      %39 = vector.load %arg8[%c0_23, %c0_24] : memref<16x1xf32, #tpu.memory_space<vmem>>, vector<16x1xf32>
      %40 = arith.subf %38, %39 : vector<16x1xf32>
      %c0_25 = arith.constant 0 : index
      %c0_26 = arith.constant 0 : index
      %41 = vector.load %arg5[%c0_25, %c0_26] : memref<16x1xf32, #tpu.memory_space<vmem>>, vector<16x1xf32>
      tpu.vector_store %arg5[%c0_25, %c0_26], %40 {strides = array<i32>} : memref<16x1xf32, #tpu.memory_space<vmem>>, vector<16x1xf32>,
    } else {
    }
    return
  }
  func.func @transform_0(%arg0: i32, %arg1: i32) -> (i32, i32) {
    %c0_i32 = arith.constant 0 : i32
    %c0_i32_0 = arith.constant 0 : i32
    return %arg0, %c0_i32 : i32, i32
  }
  func.func @transform_1(%arg0: i32, %arg1: i32) -> (i32, i32) {
    %c0_i32 = arith.constant 0 : i32
    %c0_i32_0 = arith.constant 0 : i32
    return %arg1, %c0_i32 : i32, i32
  }
  func.func @transform_2(%arg0: i32, %arg1: i32) -> (i32, i32) {
    %c0_i32 = arith.constant 0 : i32
    %c0_i32_0 = arith.constant 0 : i32
    return %arg0, %c0_i32 : i32, i32
  }
  func.func @transform_3(%arg0: i32, %arg1: i32) -> (i32, i32) {
    %c0_i32 = arith.constant 0 : i32
    %c0_i32_0 = arith.constant 0 : i32
    return %arg0, %c0_i32 : i32, i32
  }
}

</mosaic_0001>

<llo_original>
// kernel: tpu_custom_call.1
$region0: #{tpu_custom_call.1}
  #allocation0 [shape = 'u32[]', space=smem, size = 0x4, offset = 0x4, fixed_abs, tag = 'smem constant byte address 0x4 - core index']
  #allocation1 [shape = 'u32[144,128]{1,0:T(1,128)}', space=vmem, size = 0x12000, scoped, tag = 'internal scratch']
  #allocation2 [shape = 'f32[16,1]{1,0:T(8,128)}', space=vmem, size = 0x2000, scoped, tag = 'scratch operand']
  #allocation3 [shape = 'f32[16,1]{1,0:T(8,128)}', space=vmem, size = 0x2000, scoped, tag = 'scratch operand']
  #allocation4 [shape = 'f32[16,1]{1,0:T(8,128)}', space=vmem, size = 0x2000, scoped, tag = 'scratch operand']
  %s0 = inlined_call_operand.vmem [shape: bf16[16,32], index: 0, kind: input, shape index: {}]
  %s1 = inlined_call_operand.vmem [shape: bf16[16,32], index: 1, kind: input, shape index: {}]
  %s2 = inlined_call_operand.vmem [shape: f32[16,1], index: 2, kind: input, shape index: {}]
  %s3 = inlined_call_operand.vmem [shape: f32[16,1], index: 3, kind: output, shape index: {}]
  %s4 = sld [smem:[#allocation0]]
  $region34: #{tpu_custom_call.1} parent=0
    _
  %s6 = ssub.s32 1, %s4
  %s7 = scalar_select 0, %s6, %s4
  // Predicated region
  $region2: #{tpu_custom_call.1} parent=0 // pred_check
    _
  $region3: #{tpu_custom_call.1} parent=0 // pred_check_branch
    %9 = sbr.rel (0) target = $region5
  $region4: #{tpu_custom_call.1} parent=0 // pred_region
    _
  $region5: #{tpu_custom_call.1} parent=0 // pred_fallthru
    _
  // Predicated region
  $region6: #{tpu_custom_call.1} parent=0 // pred_check
    _
  $region7: #{tpu_custom_call.1} parent=0 // pred_check_branch
    %11 = sbr.rel (0) target = $region9
  $region8: #{tpu_custom_call.1} parent=0 // pred_region
    _
  $region9: #{tpu_custom_call.1} parent=0 // pred_fallthru
    _
  // Predicated region
  $region10: #{tpu_custom_call.1} parent=0 // pred_check
    _
  $region11: #{tpu_custom_call.1} parent=0 // pred_check_branch
    %13 = sbr.rel (0) target = $region13
  $region12: #{tpu_custom_call.1} parent=0 // pred_region
    _
  $region13: #{tpu_custom_call.1} parent=0 // pred_fallthru
    _
  %p15 = scmp.eq.s32.totalorder 0, 0
  // Predicated region
  $region14: #{tpu_custom_call.1} parent=0 // pred_check
    %p16 = pneg %p15
  $region15: #{tpu_custom_call.1} parent=0 // pred_check_branch
    %18 = sbr.rel (%p16) target = $region17
  $region16: #{tpu_custom_call.1} parent=0 // pred_region
    %vm19 = vcmask 7168
    %20 = vst.msk [vmem:[#allocation2] sm:$0xff] %vm19, -inf
    %21 = vst.msk [vmem:[#allocation2 + $0x8] sm:$0xff] %vm19, -inf
    %22 = vst.msk [vmem:[#allocation3] sm:$0xff] %vm19, 0.0
    %23 = vst.msk [vmem:[#allocation3 + $0x8] sm:$0xff] %vm19, 0.0
  $region17: #{tpu_custom_call.1} parent=0 // pred_fallthru
    _
  %v24 = vld [vmem:[%s0] sm:$0xf]
  %v25 = vld [vmem:[%s0 + $0x4] sm:$0xf]
  %v26 = vld [vmem:[%s1] sm:$0xf]
  %v27 = vld [vmem:[%s1 + $0x4] sm:$0xf]
  %v30 = vunpack.c.l.b16 %v24
  %v31 = vunpack.c.l.b16 %v25
  %v32 = vpack.c.b16 %v31, %v30
  %v35 = vunpack.c.l.b16 %v26
  %v36 = vunpack.c.l.b16 %v27
  %v37 = vpack.c.b16 %v36, %v35
  %vm38 = vcmask 261120
  %v40 = vsel %vm38, %v32, 0
  %v43 = vsel %vm38, %v37, 0
  %45 = vmatprep.subr.bf16.mxu0 0
  %46 = vmatpush1.bf16.xpose.msra.mxu0 0
  %47 = vmatprep.subr.bf16.mxu0 0
  %48 = vmatpush1.bf16.xpose.msra.mxu0 0
  %49 = vmatprep.subr.bf16.mxu0 0
  %50 = vmatpush1.bf16.xpose.msra.mxu0 0
  %51 = vmatprep.subr.bf16.mxu0 0
  %52 = vmatpush1.bf16.xpose.msra.mxu0 0
  %53 = vmatprep.subr.bf16.mxu0 0
  %54 = vmatpush1.bf16.xpose.msra.mxu0 0
  %55 = vmatprep.subr.bf16.mxu0 0
  %56 = vmatpush1.bf16.xpose.msra.mxu0 0
  %57 = vmatprep.subr.bf16.mxu0 0
  %58 = vmatpush1.bf16.xpose.msra.mxu0 0
  %59 = vmatprep.subr.bf16.mxu0 0
  %60 = vmatpush1.bf16.xpose.msra.mxu0 %v43
  %61 = vmatprep.subr.bf16.mxu0 0
  %62 = vmatpush2.bf16.xpose.msra.mxu0 0
  %63 = vmatprep.subr.bf16.mxu0 0
  %64 = vmatpush2.bf16.xpose.msra.mxu0 0
  %65 = vmatprep.subr.bf16.mxu0 0
  %66 = vmatpush2.bf16.xpose.msra.mxu0 0
  %67 = vmatprep.subr.bf16.mxu0 0
  %68 = vmatpush2.bf16.xpose.msra.mxu0 0
  %69 = vmatprep.subr.bf16.mxu0 0
  %70 = vmatpush2.bf16.xpose.msra.mxu0 0
  %71 = vmatprep.subr.bf16.mxu0 0
  %72 = vmatpush2.bf16.xpose.msra.mxu0 0
  %73 = vmatprep.subr.bf16.mxu0 0
  %74 = vmatpush2.bf16.xpose.msra.mxu0 0
  %75 = vmatprep.subr.bf16.mxu0 0
  %76 = vmatpush2.bf16.xpose.msra.mxu0 0
  %77 = vmatprep.mubr.bf16.mxu0 0
  %78 = vmatmul.mubr.bf16.gmra.mxu0 %v40
  %v79 = vpop.f32.mrf.mxu0
  %v80 = vadd.f32 0.0, %v79
  %v81 = vpop.f32.mrf.mxu0
  %v82 = vpop.f32.mrf.mxu0
  %v83 = vadd.f32 0.0, %v82
  %v84 = vpop.f32.mrf.mxu0
  %85 = vdwg.mxu0
  // Predicated region
  $region18: #{tpu_custom_call.1} parent=0 // pred_check
    %p86 = pneg %p15
  $region19: #{tpu_custom_call.1} parent=0 // pred_check_branch
    %88 = sbr.rel (%p86) target = $region21
  $region20: #{tpu_custom_call.1} parent=0 // pred_region
    %v89 = vld [vmem:[%s2] sm:$0xff]
    %v90 = vld [vmem:[%s2 + $0x8] sm:$0xff]
    %93 = vrot.lane.b32.xlu0 %v80, 1
    %v94 = vpop.permute.xlu0 %93
    %95 = vrot.lane.b32.xlu0 %v83, 1
    %v96 = vpop.permute.xlu0 %95
    %v99 = vsub.f32 %v80, %v94
    %v100 = vsub.f32 %v83, %v96
    %103 = vrot.lane.b32.xlu0 %v99, 127
    %v104 = vpop.permute.xlu0 %103
    %105 = vrot.lane.b32.xlu0 %v100, 127
    %v106 = vpop.permute.xlu0 %105
    %v109 = vmul.f32 %v89, %v104
    %v110 = vmul.f32 %v90, %v106
    %v111 = vadd.f32 %v80, %v109
    %v112 = vadd.f32 %v83, %v110
    %vm113 = vcmask 7168
    %114 = vst.msk [vmem:[#allocation4] sm:$0xff] %vm113, %v111
    %115 = vst.msk [vmem:[#allocation4 + $0x8] sm:$0xff] %vm113, %v112
  $region21: #{tpu_custom_call.1} parent=0 // pred_fallthru
    _
  %v116 = vlaneseq
  %v117 = vand.u32 %v116, 127
  %s118 = smul.u32 0, 16
  %s119 = ssub.s32 8, %s118
  %v120 = vstv %s119
  %vm121 = vcmp.lt.s32.totalorder %v117, %v120
  %v122 = vsel %vm121, %v80, -1e+30
  %v123 = vsel %vm121, %v83, -1e+30
  %v124 = vld [vmem:[#allocation2] sm:$0xff]
  %v125 = vld [vmem:[#allocation2 + $0x8] sm:$0xff]
  %vm126 = vcmask 130048
  %v127 = vsel %vm126, %v122, -inf
  %128 = vmax.xlane.f32.xlu0 %v127
  %v129 = vpop.xlane.xlu0 %128
  %v130 = vsel %vm126, %v123, -inf
  %131 = vmax.xlane.f32.xlu0 %v130
  %v132 = vpop.xlane.xlu0 %131
  %v133 = vmax.f32 %v124, %v129
  %v134 = vmax.f32 %v125, %v132
  %v135 = vsub.f32 %v124, %v133
  %v136 = vsub.f32 %v125, %v134
  %v137 = vmul.f32 %v135, 1.442695
  %v138 = vpow.pop %v137
  %v139 = vmul.f32 %v136, 1.442695
  %v140 = vpow.pop %v139
  %v141 = vld [vmem:[#allocation3] sm:$0xff]
  %v142 = vld [vmem:[#allocation3 + $0x8] sm:$0xff]
  %v143 = vmul.f32 %v138, %v141
  %v144 = vmul.f32 %v140, %v142
  %146 = vset.pattern.permute.xlu0 0
  %147 = vperm.xlu0 %146, %v133
  %v148 = vpop.permute.xlu0 %147
  %151 = vset.pattern.permute.xlu0 0
  %152 = vperm.xlu0 %151, %v134
  %v153 = vpop.permute.xlu0 %152
  %v155 = vsub.f32 %v122, %v148
  %v156 = vsub.f32 %v123, %v153
  %v157 = vmul.f32 %v155, 1.442695
  %v158 = vpow.pop %v157
  %v159 = vmul.f32 %v156, 1.442695
  %v160 = vpow.pop %v159
  %v161 = vsel %vm126, %v158, 0.0
  %162 = vadd.xlane.f32.xlu0 %v161
  %v163 = vpop.xlane.xlu0 %162
  %v164 = vsel %vm126, %v160, 0.0
  %165 = vadd.xlane.f32.xlu0 %v164
  %v166 = vpop.xlane.xlu0 %165
  %v167 = vadd.f32 %v143, %v163
  %v168 = vadd.f32 %v144, %v166
  %vm169 = vcmask 7168
  %170 = vst.msk [vmem:[#allocation3] sm:$0xff] %vm169, %v167
  %171 = vst.msk [vmem:[#allocation3 + $0x8] sm:$0xff] %vm169, %v168
  %172 = vst.msk [vmem:[#allocation2] sm:$0xff] %vm169, %v133
  %173 = vst.msk [vmem:[#allocation2 + $0x8] sm:$0xff] %vm169, %v134
  // Predicated region
  $region22: #{tpu_custom_call.1} parent=0 // pred_check
    %p174 = pneg %p15
  $region23: #{tpu_custom_call.1} parent=0 // pred_check_branch
    %176 = sbr.rel (%p174) target = $region25
  $region24: #{tpu_custom_call.1} parent=0 // pred_region
    %v177 = vld [vmem:[#allocation2] sm:$0xff]
    %v178 = vld [vmem:[#allocation2 + $0x8] sm:$0xff]
    %v179 = vld [vmem:[#allocation3] sm:$0xff]
    %v180 = vld [vmem:[#allocation3 + $0x8] sm:$0xff]
    %v181 = vlog2.pop %v179
    %v182 = vmul.f32 %v181, 0.6931472
    %v183 = vlog2.pop %v180
    %v184 = vmul.f32 %v183, 0.6931472
    %v185 = vadd.f32 %v177, %v182
    %v186 = vadd.f32 %v178, %v184
    %v187 = vld [vmem:[#allocation4] sm:$0xff]
    %v188 = vld [vmem:[#allocation4 + $0x8] sm:$0xff]
    %v189 = vsub.f32 %v185, %v187
    %v190 = vsub.f32 %v186, %v188
    %191 = vst.msk [vmem:[%s3] sm:$0xff] %vm169, %v189
    %192 = vst.msk [vmem:[%s3 + $0x8] sm:$0xff] %vm169, %v190
  $region25: #{tpu_custom_call.1} parent=0 // pred_fallthru
    _
  // Predicated region
  $region26: #{tpu_custom_call.1} parent=0 // pred_check
    _
  $region27: #{tpu_custom_call.1} parent=0 // pred_check_branch
    %194 = sbr.rel (0) target = $region29
  $region28: #{tpu_custom_call.1} parent=0 // pred_region
    _
  $region29: #{tpu_custom_call.1} parent=0 // pred_fallthru
    _
  // Predicated region
  $region30: #{tpu_custom_call.1} parent=0 // pred_check
    _
  $region31: #{tpu_custom_call.1} parent=0 // pred_check_branch
    %196 = sbr.rel (0) target = $region33
  $region32: #{tpu_custom_call.1} parent=0 // pred_region
    _
  $region33: #{tpu_custom_call.1} parent=0 // pred_fallthru
    _

</llo_original>
